<compile_context>
chip_gen: v6e
topology: v6e:2x2x1
jax: 0.10.0
libtpu: 0.0.40
codegen_flags: <defaults>
</compile_context>

<pallas_src>
import functools

import jax
import jax.numpy as jnp
from jax.experimental import pallas as pl
from jax.experimental.pallas import tpu as pltpu


def _round_up(x, m):
    return ((x + m - 1) // m) * m


# ----------------------------------------------------------------------------
# Kernels
# ----------------------------------------------------------------------------
def _ffn_resident_kernel(x_ref, w1_ref, b1_ref, w2_ref, b2_ref, o_ref):
    """Weights fully resident in VMEM; grid = (row_tiles,). No accumulator."""
    x = x_ref[...].astype(w1_ref.dtype)
    h = jnp.dot(x, w1_ref[...], preferred_element_type=jnp.float32)
    h = jnp.maximum(h + b1_ref[...], 0.0)
    y = jnp.dot(h.astype(w2_ref.dtype), w2_ref[...],
                preferred_element_type=jnp.float32)
    o_ref[...] = (y + b2_ref[...]).astype(o_ref.dtype)


def _ffn_tiled_kernel(x_ref, w1_ref, b1_ref, w2_ref, b2_ref, o_ref, acc_ref):
    """Hidden dim tiled; grid = (row_tiles, h_tiles); resident f32 accumulator."""
    k = pl.program_id(1)

    @pl.when(k == 0)
    def _():
        acc_ref[...] = jnp.zeros_like(acc_ref)

    x = x_ref[...].astype(w1_ref.dtype)
    h = jnp.dot(x, w1_ref[...], preferred_element_type=jnp.float32)
    h = jnp.maximum(h + b1_ref[...], 0.0)
    acc_ref[...] += jnp.dot(h.astype(w2_ref.dtype), w2_ref[...],
                            preferred_element_type=jnp.float32)

    @pl.when(k == pl.num_programs(1) - 1)
    def _():
        o_ref[...] = (acc_ref[...] + b2_ref[...]).astype(o_ref.dtype)


# ----------------------------------------------------------------------------
# Tiling / VMEM budgeting
# ----------------------------------------------------------------------------
_VMEM_CAP = None


def _vmem_capacity_bytes():
    """Physical VMEM per core (128 MiB v5e/v6e, 64 MiB per-TC v7x)."""
    global _VMEM_CAP
    if _VMEM_CAP is None:
        cap = 0
        try:
            info = pltpu.get_tpu_info()
            cap = int(getattr(info, "vmem_capacity_bytes", 0))
        except Exception:
            cap = 0
        _VMEM_CAP = cap if cap > 0 else (64 * 1024 * 1024)  # conservative: v7x
    return _VMEM_CAP


def _footprint_bytes(tm, th, resident, E_pad, x_isz, c_isz, o_isz):
    """Approximate VMEM footprint of one pipeline configuration (bytes)."""
    fp = 2 * tm * E_pad * x_isz            # x tile (double-buffered, orig dtype)
    fp += 2 * tm * E_pad * o_isz           # out tile (double-buffered)
    fp += 2 * E_pad * th * c_isz           # W1 slice (double-buffered)
    fp += 2 * th * E_pad * c_isz           # W2 slice (double-buffered)
    fp += 2 * 8 * th * 4 + 2 * 8 * E_pad * 4   # biases (sublane-padded, f32)
    fp += tm * th * 4                      # hidden intermediate (f32)
    if not resident:
        fp += tm * E_pad * 4               # f32 accumulator scratch
    return fp


def _select_tiling(M, E_pad, H_pad, x_isz, c_isz, o_isz, force_th=None):
    """Pick (tm, th, resident, vmem_limit_bytes) for the current device."""
    cap = _vmem_capacity_bytes()
    budget = int(cap * 0.70)               # headroom for compiler scratch

    row_mult = 16 if c_isz <= 2 else 8     # bf16 packs 2 rows / sublane
    M_r = _round_up(M, row_mult)

    def cands(max_rows):
        base = (1024, 768, 512, 384, 256, 192, 128, 96, 64, 32, 16, 8)
        out = []
        for t in base:
            t = min(t, max_rows, M_r)
            t = max(row_mult, (t // row_mult) * row_mult)
            if t not in out:
                out.append(t)
        return sorted(out, reverse=True)

    def fits(tm, th, resident):
        return _footprint_bytes(tm, th, resident, E_pad,
                                x_isz, c_isz, o_isz) <= budget

    n128 = H_pad // 128
    th_divs = [d * 128 for d in range(n128, 0, -1) if n128 % d == 0]

    if force_th is not None:
        assert H_pad % force_th == 0 and force_th % 128 == 0
        resident = False
        th = force_th
        tm = next((t for t in cands(1024) if fits(t, th, False)),
                  cands(1024)[-1])
    else:
        # 1) Weights-resident fast path (th == H_pad, no H grid axis).
        resident_tm = next((t for t in cands(512) if fits(t, H_pad, True)), None)
        if resident_tm is not None:
            tm, th, resident = resident_tm, H_pad, True
        else:
            # 2) H-tiled path: maximize tm first (weight-stream intensity),
            #    then grow th among divisors of H_pad.
            resident = False
            tm = next((t for t in cands(1024) if fits(t, 128, False)),
                      cands(1024)[-1])
            th = next((c for c in th_divs if fits(tm, c, False)), 128)

    # Megacore: give the 'parallel' row axis >= 2 tiles when M allows, so both
    # v7x TensorCores get work (costs ~nothing on single-TC chips).
    if M_r // tm < 2 and tm >= 256:
        tm = max(row_mult, ((tm // 2) // row_mult) * row_mult)

    fp = _footprint_bytes(tm, th, resident, E_pad, x_isz, c_isz, o_isz)
    vmem_limit = min(cap, max(32 * 1024 * 1024, int(fp * 1.3) + (2 << 20)))
    return tm, th, resident, vmem_limit


# ----------------------------------------------------------------------------
# Jitted forward over pre-padded / pre-cast weights
# ----------------------------------------------------------------------------
@functools.partial(jax.jit,
                   static_argnames=("tm", "th", "resident", "vmem_limit"))
def _ffn_call(x, w1p, b1p, w2p, b2p, *, tm, th, resident, vmem_limit):
    B, S, E = x.shape
    E_pad, H_pad = w1p.shape
    M = B * S
    M_pad = _round_up(M, tm)
    out_dtype = x.dtype

    x2d = x.reshape(M, E)
    if M_pad != M or E_pad != E:
        x2d = jnp.pad(x2d, ((0, M_pad - M), (0, E_pad - E)))

    n_row_tiles = M_pad // tm
    weight_reads = 1 if resident else n_row_tiles
    c_isz = jnp.dtype(w1p.dtype).itemsize
    cost = pl.CostEstimate(
        flops=2 * 2 * M_pad * E_pad * H_pad,
        transcendentals=0,
        bytes_accessed=(M_pad * E_pad * jnp.dtype(x.dtype).itemsize
                        + M_pad * E_pad * jnp.dtype(out_dtype).itemsize
                        + weight_reads * (w1p.size + w2p.size) * c_isz
                        + weight_reads * (b1p.size + b2p.size) * 4),
    )

    if resident:
        out2d = pl.pallas_call(
            _ffn_resident_kernel,
            out_shape=jax.ShapeDtypeStruct((M_pad, E_pad), out_dtype),
            grid_spec=pltpu.PrefetchScalarGridSpec(
                num_scalar_prefetch=0,
                grid=(n_row_tiles,),
                in_specs=[
                    pl.BlockSpec((tm, E_pad), lambda i: (i, 0)),      # x rows
                    pl.BlockSpec((E_pad, H_pad), lambda i: (0, 0)),   # W1 (resident)
                    pl.BlockSpec((1, H_pad), lambda i: (0, 0)),       # b1
                    pl.BlockSpec((H_pad, E_pad), lambda i: (0, 0)),   # W2 (resident)
                    pl.BlockSpec((1, E_pad), lambda i: (0, 0)),       # b2
                ],
                out_specs=pl.BlockSpec((tm, E_pad), lambda i: (i, 0)),
            ),
            compiler_params=pltpu.CompilerParams(
                dimension_semantics=("parallel",),
                vmem_limit_bytes=vmem_limit,
            ),
            cost_estimate=cost,
        )(x2d, w1p, b1p, w2p, b2p)
    else:
        out2d = pl.pallas_call(
            _ffn_tiled_kernel,
            out_shape=jax.ShapeDtypeStruct((M_pad, E_pad), out_dtype),
            grid_spec=pltpu.PrefetchScalarGridSpec(
                num_scalar_prefetch=0,
                grid=(n_row_tiles, H_pad // th),
                in_specs=[
                    pl.BlockSpec((tm, E_pad), lambda i, k: (i, 0)),   # x rows
                    pl.BlockSpec((E_pad, th), lambda i, k: (0, k)),   # W1 slice
                    pl.BlockSpec((1, th), lambda i, k: (0, k)),       # b1 slice
                    pl.BlockSpec((th, E_pad), lambda i, k: (k, 0)),   # W2 slice
                    pl.BlockSpec((1, E_pad), lambda i, k: (0, 0)),    # b2
                ],
                out_specs=pl.BlockSpec((tm, E_pad), lambda i, k: (i, 0)),
                scratch_shapes=[pltpu.VMEM((tm, E_pad), jnp.float32)],
            ),
            compiler_params=pltpu.CompilerParams(
                dimension_semantics=("parallel", "arbitrary"),
                vmem_limit_bytes=vmem_limit,
            ),
            cost_estimate=cost,
        )(x2d, w1p, b1p, w2p, b2p)

    if M_pad != M or E_pad != E:
        out2d = out2d[:M, :E]
    return out2d.reshape(B, S, E)


# ----------------------------------------------------------------------------
# Module-like wrapper (pads / casts weights exactly once)
# ----------------------------------------------------------------------------
class PositionalFF:
    """JAX/Pallas port of PyTorch PositionalFF: f2(relu(f1(x))).

    Weights are stored in (in, out) layout: w1 (E, 4E), w2 (4E, E), so the
    forward is relu(x @ w1 + b1) @ w2 + b2 (equivalent to nn.Linear's x @ W^T).
    """

    def __init__(self, w1, b1, w2, b2, *, compute_dtype=jnp.bfloat16,
                 force_th=None):
        E, H = w1.shape
        assert w2.shape == (H, E) and b1.shape == (H,) and b2.shape == (E,)
        self.E, self.H = E, H
        self.compute_dtype = jnp.dtype(compute_dtype)
        self.force_th = force_th

        E_pad = max(_round_up(E, 128), 128)
        H_pad = max(_round_up(H, 128), 128)
        self.E_pad, self.H_pad = E_pad, H_pad

        # Pad + cast ONCE (not in the per-call path).
        self.w1p = jnp.pad(w1, ((0, E_pad - E), (0, H_pad - H))).astype(compute_dtype)
        self.w2p = jnp.pad(w2, ((0, H_pad - H), (0, E_pad - E))).astype(compute_dtype)
        self.b1p = jnp.pad(b1, (0, H_pad - H)).astype(jnp.float32).reshape(1, H_pad)
        self.b2p = jnp.pad(b2, (0, E_pad - E)).astype(jnp.float32).reshape(1, E_pad)

    def __call__(self, x):
        B, S, E = x.shape
        assert E == self.E
        tm, th, resident, vmem_limit = _select_tiling(
            B * S, self.E_pad, self.H_pad,
            x_isz=jnp.dtype(x.dtype).itemsize,
            c_isz=self.compute_dtype.itemsize,
            o_isz=jnp.dtype(x.dtype).itemsize,
            force_th=self.force_th,
        )
        return _ffn_call(x, self.w1p, self.b1p, self.w2p, self.b2p,
                         tm=tm, th=th, resident=resident,
                         vmem_limit=vmem_limit)


def init_params(key, emb):
    """Deterministic nn.Linear-style init: U(-1/sqrt(fan_in), 1/sqrt(fan_in))."""
    hidden = emb * 4
    k1, k2, k3, k4 = jax.random.split(key, 4)
    bound1 = 1.0 / (emb ** 0.5)
    bound2 = 1.0 / (hidden ** 0.5)
    # Stored already transposed to (in, out) for the kernel.
    w1 = jax.random.uniform(k1, (emb, hidden), jnp.float32, -bound1, bound1)
    b1 = jax.random.uniform(k2, (hidden,), jnp.float32, -bound1, bound1)
    w2 = jax.random.uniform(k3, (hidden, emb), jnp.float32, -bound2, bound2)
    b2 = jax.random.uniform(k4, (emb,), jnp.float32, -bound2, bound2)
    return w1, b1, w2, b2


def _reference(x, w1, b1, w2, b2):
    hi = jax.lax.Precision.HIGHEST
    h = jnp.maximum(jnp.dot(x, w1, precision=hi) + b1, 0.0)
    return jnp.dot(h, w2, precision=hi) + b2


if __name__ == "__main__":
    # Small config: embedding_size=32 -> hidden=128; batch=2, seq=8.
    B, S, E = 2, 8, 32
    key = jax.random.PRNGKey(0)
    kx, kp = jax.random.split(key)
    x = jax.random.normal(kx, (B, S, E), jnp.float32)
    w1, b1, w2, b2 = init_params(kp, E)
    ref = _reference(x, w1, b1, w2, b2)

    # Exact f32 path (weights-resident fast path; tight tolerance).
    ff_exact = PositionalFF(w1, b1, w2, b2, compute_dtype=jnp.float32)
    out_f32 = jax.block_until_ready(ff_exact(x))
    assert out_f32.shape == (B, S, E)
    assert jnp.allclose(out_f32, ref, atol=1e-4, rtol=1e-4)

    # Default fast path: bf16 MXU inputs with f32 accumulation.
    ff_fast = PositionalFF(w1, b1, w2, b2)
    out_bf16 = jax.block_until_ready(ff_fast(x))
    assert out_bf16.shape == (B, S, E)
    assert jnp.allclose(out_bf16, ref, atol=3e-2, rtol=3e-2)

    # Exercise the H-tiled accumulator path (forced th) on a slightly larger
    # config: embedding_size=128 -> hidden=512, 4 hidden tiles.
    B2, S2, E2 = 2, 64, 128
    k1, k2 = jax.random.split(jax.random.PRNGKey(1))
    x2 = jax.random.normal(k1, (B2, S2, E2), jnp.float32)
    w1b, b1b, w2b, b2b = init_params(k2, E2)
    ref2 = _reference(x2, w1b, b1b, w2b, b2b)
    ff_tiled = PositionalFF(w1b, b1b, w2b, b2b, compute_dtype=jnp.float32,
                            force_th=128)
    out2 = jax.block_until_ready(ff_tiled(x2))
    assert out2.shape == (B2, S2, E2)
    assert jnp.allclose(out2, ref2, atol=1e-4, rtol=1e-4)

    print("KERNEL_OK")
</pallas_src>

<mosaic_0001>
module attributes {stable_mosaic.version = 11 : i64} {
  func.func @_ffn_resident_kernel(%arg0: i32, %arg1: memref<16x128xf32, #tpu.memory_space<vmem>>, %arg2: memref<128x128xf32, #tpu.memory_space<vmem>>, %arg3: memref<1x128xf32, #tpu.memory_space<vmem>>, %arg4: memref<128x128xf32, #tpu.memory_space<vmem>>, %arg5: memref<1x128xf32, #tpu.memory_space<vmem>>, %arg6: memref<16x128xf32, #tpu.memory_space<vmem>>) attributes {dimension_semantics = [#tpu.dimension_semantics<parallel>], iteration_bounds = array<i64: 1>, scalar_prefetch = 0 : i64, scratch_operands = 0 : i64, tpu.core_type = #tpu.core_type<tc>, window_params = [{transform_indices = @transform_0, window_bounds = array<i64: 16, 128>}, {pipeline_mode = #tpu.pipeline_mode<synchronous>, transform_indices = @transform_1, window_bounds = array<i64: 128, 128>}, {pipeline_mode = #tpu.pipeline_mode<synchronous>, transform_indices = @transform_2, window_bounds = array<i64: 1, 128>}, {pipeline_mode = #tpu.pipeline_mode<synchronous>, transform_indices = @transform_3, window_bounds = array<i64: 128, 128>}, {pipeline_mode = #tpu.pipeline_mode<synchronous>, transform_indices = @transform_4, window_bounds = array<i64: 1, 128>}, {transform_indices = @transform_5, window_bounds = array<i64: 16, 128>}]} {
    %c0 = arith.constant 0 : index
    %c0_0 = arith.constant 0 : index
    %0 = vector.load %arg1[%c0, %c0_0] : memref<16x128xf32, #tpu.memory_space<vmem>>, vector<16x128xf32>
    %c0_1 = arith.constant 0 : index
    %c0_2 = arith.constant 0 : index
    %1 = vector.load %arg2[%c0_1, %c0_2] : memref<128x128xf32, #tpu.memory_space<vmem>>, vector<128x128xf32>
    %cst = arith.constant dense<0.000000e+00> : vector<16x128xf32>
    %2 = tpu.matmul %0, %1, %cst {dimension_numbers = #tpu.dot_dimension_numbers<[1], [0], [0], [1], [0, 0, 1, 1], [], []>} : vector<16x128xf32>, vector<128x128xf32>, vector<16x128xf32> -> vector<16x128xf32>
    %c0_3 = arith.constant 0 : index
    %c0_4 = arith.constant 0 : index
    %3 = vector.load %arg3[%c0_3, %c0_4] : memref<1x128xf32, #tpu.memory_space<vmem>>, vector<1x128xf32>
    %4 = vector.broadcast %3 : vector<1x128xf32> to vector<16x128xf32>
    %5 = arith.addf %2, %4 : vector<16x128xf32>
    %cst_5 = arith.constant 0.000000e+00 : f32
    %6 = vector.broadcast %cst_5 : f32 to vector<16x128xf32>
    %7 = arith.maximumf %5, %6 : vector<16x128xf32>
    %c0_6 = arith.constant 0 : index
    %c0_7 = arith.constant 0 : index
    %8 = vector.load %arg4[%c0_6, %c0_7] : memref<128x128xf32, #tpu.memory_space<vmem>>, vector<128x128xf32>
    %cst_8 = arith.constant dense<0.000000e+00> : vector<16x128xf32>
    %9 = tpu.matmul %7, %8, %cst_8 {dimension_numbers = #tpu.dot_dimension_numbers<[1], [0], [0], [1], [0, 0, 1, 1], [], []>} : vector<16x128xf32>, vector<128x128xf32>, vector<16x128xf32> -> vector<16x128xf32>
    %c0_9 = arith.constant 0 : index
    %c0_10 = arith.constant 0 : index
    %10 = vector.load %arg5[%c0_9, %c0_10] : memref<1x128xf32, #tpu.memory_space<vmem>>, vector<1x128xf32>
    %11 = vector.broadcast %10 : vector<1x128xf32> to vector<16x128xf32>
    %12 = arith.addf %9, %11 : vector<16x128xf32>
    %c0_11 = arith.constant 0 : index
    %c0_12 = arith.constant 0 : index
    %13 = vector.load %arg6[%c0_11, %c0_12] : memref<16x128xf32, #tpu.memory_space<vmem>>, vector<16x128xf32>
    tpu.vector_store %arg6[%c0_11, %c0_12], %12 {strides = array<i32>} : memref<16x128xf32, #tpu.memory_space<vmem>>, vector<16x128xf32>,
    return
  }
  func.func @transform_0(%arg0: i32) -> (i32, i32) {
    %c0_i32 = arith.constant 0 : i32
    %c0_i32_0 = arith.constant 0 : i32
    return %arg0, %c0_i32 : i32, i32
  }
  func.func @transform_1(%arg0: i32) -> (i32, i32) {
    %c0_i32 = arith.constant 0 : i32
    %c0_i32_0 = arith.constant 0 : i32
    %c0_i32_1 = arith.constant 0 : i32
    return %c0_i32, %c0_i32_0 : i32, i32
  }
  func.func @transform_2(%arg0: i32) -> (i32, i32) {
    %c0_i32 = arith.constant 0 : i32
    %c0_i32_0 = arith.constant 0 : i32
    %c0_i32_1 = arith.constant 0 : i32
    return %c0_i32, %c0_i32_0 : i32, i32
  }
  func.func @transform_3(%arg0: i32) -> (i32, i32) {
    %c0_i32 = arith.constant 0 : i32
    %c0_i32_0 = arith.constant 0 : i32
    %c0_i32_1 = arith.constant 0 : i32
    return %c0_i32, %c0_i32_0 : i32, i32
  }
  func.func @transform_4(%arg0: i32) -> (i32, i32) {
    %c0_i32 = arith.constant 0 : i32
    %c0_i32_0 = arith.constant 0 : i32
    %c0_i32_1 = arith.constant 0 : i32
    return %c0_i32, %c0_i32_0 : i32, i32
  }
  func.func @transform_5(%arg0: i32) -> (i32, i32) {
    %c0_i32 = arith.constant 0 : i32
    %c0_i32_0 = arith.constant 0 : i32
    return %arg0, %c0_i32 : i32, i32
  }
}

</mosaic_0001>

<llo_original>
// kernel: _ffn_call.1
$region0: #{_ffn_call.1}
  #allocation0 [shape = 'u32[]', space=smem, size = 0x4, offset = 0x4, fixed_abs, tag = 'smem constant byte address 0x4 - core index']
  #allocation1 [shape = 'u32[144,128]{1,0:T(1,128)}', space=vmem, size = 0x12000, scoped, tag = 'internal scratch']
  %s0 = inlined_call_operand.vmem [shape: f32[16,128], index: 0, kind: input, shape index: {}]
  %s1 = inlined_call_operand.hbm [shape: f32[128,128], index: 1, kind: input, shape index: {}]
  %s2 = inlined_call_operand.vmem [shape: f32[1,128], index: 2, kind: input, shape index: {}]
  %s3 = inlined_call_operand.hbm [shape: f32[128,128], index: 3, kind: input, shape index: {}]
  %s4 = inlined_call_operand.vmem [shape: f32[1,128], index: 4, kind: input, shape index: {}]
  %s5 = inlined_call_operand.vmem [shape: f32[16,128], index: 5, kind: output, shape index: {}]
  %s6 = sld [smem:[#allocation0]]
  $region38: #{_ffn_call.1} parent=0
    _
  %s8 = ssub.s32 1, %s6
  %s9 = scalar_select 0, %s8, %s6
  $region1: #{_ffn_call.1} parent=0
    #allocation2 [shape = 'u8[65536]{0}', space=vmem, size = 0x10000, scoped, tag = 'input window, operand 1, single buffered']
    #allocation3 [shape = 's32[1]{0}', space=sflag, size = 0x4, scoped, tag = 'scoped memory for _ffn_call.1']
    #allocation4 [shape = 'u8[65536]{0}', space=vmem, size = 0x10000, scoped, tag = 'input window, operand 3, single buffered']
    #allocation5 [shape = 's32[1]{0}', space=sflag, size = 0x4, scoped, tag = 'scoped memory for _ffn_call.1']
    %10 = vsyncpa [#allocation3], 0
    %11 = vsyncpa [#allocation5], 0
    // Predicated region
    $region2: #{_ffn_call.1} parent=1 // pred_check
      _
    $region3: #{_ffn_call.1} parent=1 // pred_check_branch
      %13 = sbr.rel (0) target = $region5
    $region4: #{_ffn_call.1} parent=1 // pred_region
      _
    $region5: #{_ffn_call.1} parent=1 // pred_fallthru
      _
    // Predicated region
    $region6: #{_ffn_call.1} parent=1 // pred_check
      _
    $region7: #{_ffn_call.1} parent=1 // pred_check_branch
      %15 = sbr.rel (0) target = $region9
    $region8: #{_ffn_call.1} parent=1 // pred_region
      %s17 = ssub.s32 2048, 2048
      %18 = vsyncadd [#allocation3], %s17
      %s19 = sshll.u32 [#allocation2], 4
      %s20 = int_to_ptr.vmem [resolvable:$true] %s19
      %25 = dma.hbm_to_vmem [thread:$0]  %s1, 2048, %s20, [#allocation3], 128, 128, 8
    $region9: #{_ffn_call.1} parent=1 // pred_fallthru
      _
    // Predicated region
    $region10: #{_ffn_call.1} parent=1 // pred_check
      _
    $region11: #{_ffn_call.1} parent=1 // pred_check_branch
      %27 = sbr.rel (0) target = $region13
    $region12: #{_ffn_call.1} parent=1 // pred_region
      _
    $region13: #{_ffn_call.1} parent=1 // pred_fallthru
      _
    // Predicated region
    $region14: #{_ffn_call.1} parent=1 // pred_check
      _
    $region15: #{_ffn_call.1} parent=1 // pred_check_branch
      %29 = sbr.rel (0) target = $region17
    $region16: #{_ffn_call.1} parent=1 // pred_region
      %s31 = ssub.s32 2048, 2048
      %32 = vsyncadd [#allocation5], %s31
      %s33 = sshll.u32 [#allocation4], 4
      %s34 = int_to_ptr.vmem [resolvable:$true] %s33
      %39 = dma.hbm_to_vmem [thread:$0]  %s3, 2048, %s34, [#allocation5], 128, 128, 8
    $region17: #{_ffn_call.1} parent=1 // pred_fallthru
      _
    // Predicated region
    $region18: #{_ffn_call.1} parent=1 // pred_check
      _
    $region19: #{_ffn_call.1} parent=1 // pred_check_branch
      %41 = sbr.rel (0) target = $region21
    $region20: #{_ffn_call.1} parent=1 // pred_region
      _
    $region21: #{_ffn_call.1} parent=1 // pred_fallthru
      _
    // Predicated region
    $region22: #{_ffn_call.1} parent=1 // pred_check
      _
    $region23: #{_ffn_call.1} parent=1 // pred_check_branch
      %43 = sbr.rel (0) target = $region25
    $region24: #{_ffn_call.1} parent=1 // pred_region
      %44 = dma.done [#allocation3], 2048
    $region25: #{_ffn_call.1} parent=1 // pred_fallthru
      _
    // Predicated region
    $region26: #{_ffn_call.1} parent=1 // pred_check
      _
    $region27: #{_ffn_call.1} parent=1 // pred_check_branch
      %46 = sbr.rel (0) target = $region29
    $region28: #{_ffn_call.1} parent=1 // pred_region
      %47 = dma.done [#allocation5], 2048
    $region29: #{_ffn_call.1} parent=1 // pred_fallthru
      _
    %v48 = vld [vmem:[%s0] sm:$0xff]
    %v49 = vld [vmem:[%s0 + $0x8] sm:$0xff]
    %v50 = vld [vmem:[#allocation2] sm:$0xff]
    %v51 = vld [vmem:[#allocation2 + $0x8] sm:$0xff]
    %v52 = vld [vmem:[#allocation2 + $0x10] sm:$0xff]
    %v53 = vld [vmem:[#allocation2 + $0x18] sm:$0xff]
    %v54 = vld [vmem:[#allocation2 + $0x20] sm:$0xff]
    %v55 = vld [vmem:[#allocation2 + $0x28] sm:$0xff]
    %v56 = vld [vmem:[#allocation2 + $0x30] sm:$0xff]
    %v57 = vld [vmem:[#allocation2 + $0x38] sm:$0xff]
    %v58 = vld [vmem:[#allocation2 + $0x40] sm:$0xff]
    %v59 = vld [vmem:[#allocation2 + $0x48] sm:$0xff]
    %v60 = vld [vmem:[#allocation2 + $0x50] sm:$0xff]
    %v61 = vld [vmem:[#allocation2 + $0x58] sm:$0xff]
    %v62 = vld [vmem:[#allocation2 + $0x60] sm:$0xff]
    %v63 = vld [vmem:[#allocation2 + $0x68] sm:$0xff]
    %v64 = vld [vmem:[#allocation2 + $0x70] sm:$0xff]
    %v65 = vld [vmem:[#allocation2 + $0x78] sm:$0xff]
    %v66 = vld [vmem:[%s2] sm:$0x1]
    %v68 = vlaneseq
    %v69 = vshrl.u32 %v68, 7
    %v70 = vsub.s32 0, %v69
    %v71 = vrot.slane %v66, %v70
    %73 = vmatprep.subr.mxu0 0.0
    %74 = vmatpush1.msra.mxu0 %v65
    %75 = vmatprep.subr.mxu0 0.0
    %76 = vmatpush1.msra.mxu0 %v64
    %77 = vmatprep.subr.mxu0 0.0
    %78 = vmatpush1.msra.mxu0 %v63
    %79 = vmatprep.subr.mxu0 0.0
    %80 = vmatpush1.msra.mxu0 %v62
    %81 = vmatprep.subr.mxu0 0.0
    %82 = vmatpush1.msra.mxu0 %v61
    %83 = vmatprep.subr.mxu0 0.0
    %84 = vmatpush1.msra.mxu0 %v60
    %85 = vmatprep.subr.mxu0 0.0
    %86 = vmatpush1.msra.mxu0 %v59
    %87 = vmatprep.subr.mxu0 0.0
    %88 = vmatpush1.msra.mxu0 %v58
    %89 = vmatprep.subr.mxu0 0.0
    %90 = vmatpush1.msra.mxu0 %v57
    %91 = vmatprep.subr.mxu0 0.0
    %92 = vmatpush1.msra.mxu0 %v56
    %93 = vmatprep.subr.mxu0 0.0
    %94 = vmatpush1.msra.mxu0 %v55
    %95 = vmatprep.subr.mxu0 0.0
    %96 = vmatpush1.msra.mxu0 %v54
    %97 = vmatprep.subr.mxu0 0.0
    %98 = vmatpush1.msra.mxu0 %v53
    %99 = vmatprep.subr.mxu0 0.0
    %100 = vmatpush1.msra.mxu0 %v52
    %101 = vmatprep.subr.mxu0 0.0
    %102 = vmatpush1.msra.mxu0 %v51
    %103 = vmatprep.subr.mxu0 0.0
    %104 = vmatpush1.msra.mxu0 %v50
    %105 = vmatprep.subr.mxu0 0.0
    %106 = vmatpush2.msra.mxu0 0.0
    %107 = vmatprep.subr.mxu0 0.0
    %108 = vmatpush2.msra.mxu0 0.0
    %109 = vmatprep.subr.mxu0 0.0
    %110 = vmatpush2.msra.mxu0 0.0
    %111 = vmatprep.subr.mxu0 0.0
    %112 = vmatpush2.msra.mxu0 0.0
    %113 = vmatprep.subr.mxu0 0.0
    %114 = vmatpush2.msra.mxu0 0.0
    %115 = vmatprep.subr.mxu0 0.0
    %116 = vmatpush2.msra.mxu0 0.0
    %117 = vmatprep.subr.mxu0 0.0
    %118 = vmatpush2.msra.mxu0 0.0
    %119 = vmatprep.subr.mxu0 0.0
    %120 = vmatpush2.msra.mxu0 0.0
    %121 = vmatprep.subr.mxu0 0.0
    %122 = vmatpush2.msra.mxu0 0.0
    %123 = vmatprep.subr.mxu0 0.0
    %124 = vmatpush2.msra.mxu0 0.0
    %125 = vmatprep.subr.mxu0 0.0
    %126 = vmatpush2.msra.mxu0 0.0
    %127 = vmatprep.subr.mxu0 0.0
    %128 = vmatpush2.msra.mxu0 0.0
    %129 = vmatprep.subr.mxu0 0.0
    %130 = vmatpush2.msra.mxu0 0.0
    %131 = vmatprep.subr.mxu0 0.0
    %132 = vmatpush2.msra.mxu0 0.0
    %133 = vmatprep.subr.mxu0 0.0
    %134 = vmatpush2.msra.mxu0 0.0
    %135 = vmatprep.subr.mxu0 0.0
    %136 = vmatpush2.msra.mxu0 0.0
    %137 = vmatprep.mubr.f32.mxu0 0.0
    %138 = vmatmul.mubr.f32.gmra.mxu0 %v48
    %v139 = vpop.f32.mrf.mxu0
    %v140 = vadd.f32 %v71, %v139
    %v141 = vpop.f32.mrf.mxu0
    %142 = vmatprep.mubr.f32.mxu0 0.0
    %143 = vmatmul.mubr.f32.gmra.mxu0 %v49
    %v144 = vpop.f32.mrf.mxu0
    %v145 = vadd.f32 %v71, %v144
    %v146 = vpop.f32.mrf.mxu0
    %147 = vdwg.mxu0
    %v148 = vmax.f32 %v140, 0.0
    %v149 = vmax.f32 %v145, 0.0
    %v150 = vld [vmem:[#allocation4] sm:$0xff]
    %v151 = vld [vmem:[#allocation4 + $0x8] sm:$0xff]
    %v152 = vld [vmem:[#allocation4 + $0x10] sm:$0xff]
    %v153 = vld [vmem:[#allocation4 + $0x18] sm:$0xff]
    %v154 = vld [vmem:[#allocation4 + $0x20] sm:$0xff]
    %v155 = vld [vmem:[#allocation4 + $0x28] sm:$0xff]
    %v156 = vld [vmem:[#allocation4 + $0x30] sm:$0xff]
    %v157 = vld [vmem:[#allocation4 + $0x38] sm:$0xff]
    %v158 = vld [vmem:[#allocation4 + $0x40] sm:$0xff]
    %v159 = vld [vmem:[#allocation4 + $0x48] sm:$0xff]
    %v160 = vld [vmem:[#allocation4 + $0x50] sm:$0xff]
    %v161 = vld [vmem:[#allocation4 + $0x58] sm:$0xff]
    %v162 = vld [vmem:[#allocation4 + $0x60] sm:$0xff]
    %v163 = vld [vmem:[#allocation4 + $0x68] sm:$0xff]
    %v164 = vld [vmem:[#allocation4 + $0x70] sm:$0xff]
    %v165 = vld [vmem:[#allocation4 + $0x78] sm:$0xff]
    %v166 = vld [vmem:[%s4] sm:$0x1]
    %v168 = vlaneseq
    %v169 = vshrl.u32 %v168, 7
    %v170 = vsub.s32 0, %v169
    %v171 = vrot.slane %v166, %v170
    %173 = vmatprep.subr.mxu0 0.0
    %174 = vmatpush1.msra.mxu0 %v165
    %175 = vmatprep.subr.mxu0 0.0
    %176 = vmatpush1.msra.mxu0 %v164
    %177 = vmatprep.subr.mxu0 0.0
    %178 = vmatpush1.msra.mxu0 %v163
    %179 = vmatprep.subr.mxu0 0.0
    %180 = vmatpush1.msra.mxu0 %v162
    %181 = vmatprep.subr.mxu0 0.0
    %182 = vmatpush1.msra.mxu0 %v161
    %183 = vmatprep.subr.mxu0 0.0
    %184 = vmatpush1.msra.mxu0 %v160
    %185 = vmatprep.subr.mxu0 0.0
    %186 = vmatpush1.msra.mxu0 %v159
    %187 = vmatprep.subr.mxu0 0.0
    %188 = vmatpush1.msra.mxu0 %v158
    %189 = vmatprep.subr.mxu0 0.0
    %190 = vmatpush1.msra.mxu0 %v157
    %191 = vmatprep.subr.mxu0 0.0
    %192 = vmatpush1.msra.mxu0 %v156
    %193 = vmatprep.subr.mxu0 0.0
    %194 = vmatpush1.msra.mxu0 %v155
    %195 = vmatprep.subr.mxu0 0.0
    %196 = vmatpush1.msra.mxu0 %v154
    %197 = vmatprep.subr.mxu0 0.0
    %198 = vmatpush1.msra.mxu0 %v153
    %199 = vmatprep.subr.mxu0 0.0
    %200 = vmatpush1.msra.mxu0 %v152
    %201 = vmatprep.subr.mxu0 0.0
    %202 = vmatpush1.msra.mxu0 %v151
    %203 = vmatprep.subr.mxu0 0.0
    %204 = vmatpush1.msra.mxu0 %v150
    %205 = vmatprep.subr.mxu0 0.0
    %206 = vmatpush2.msra.mxu0 0.0
    %207 = vmatprep.subr.mxu0 0.0
    %208 = vmatpush2.msra.mxu0 0.0
    %209 = vmatprep.subr.mxu0 0.0
    %210 = vmatpush2.msra.mxu0 0.0
    %211 = vmatprep.subr.mxu0 0.0
    %212 = vmatpush2.msra.mxu0 0.0
    %213 = vmatprep.subr.mxu0 0.0
    %214 = vmatpush2.msra.mxu0 0.0
    %215 = vmatprep.subr.mxu0 0.0
    %216 = vmatpush2.msra.mxu0 0.0
    %217 = vmatprep.subr.mxu0 0.0
    %218 = vmatpush2.msra.mxu0 0.0
    %219 = vmatprep.subr.mxu0 0.0
    %220 = vmatpush2.msra.mxu0 0.0
    %221 = vmatprep.subr.mxu0 0.0
    %222 = vmatpush2.msra.mxu0 0.0
    %223 = vmatprep.subr.mxu0 0.0
    %224 = vmatpush2.msra.mxu0 0.0
    %225 = vmatprep.subr.mxu0 0.0
    %226 = vmatpush2.msra.mxu0 0.0
    %227 = vmatprep.subr.mxu0 0.0
    %228 = vmatpush2.msra.mxu0 0.0
    %229 = vmatprep.subr.mxu0 0.0
    %230 = vmatpush2.msra.mxu0 0.0
    %231 = vmatprep.subr.mxu0 0.0
    %232 = vmatpush2.msra.mxu0 0.0
    %233 = vmatprep.subr.mxu0 0.0
    %234 = vmatpush2.msra.mxu0 0.0
    %235 = vmatprep.subr.mxu0 0.0
    %236 = vmatpush2.msra.mxu0 0.0
    %237 = vmatprep.mubr.f32.mxu0 0.0
    %238 = vmatmul.mubr.f32.gmra.mxu0 %v148
    %v239 = vpop.f32.mrf.mxu0
    %v240 = vadd.f32 %v171, %v239
    %v241 = vpop.f32.mrf.mxu0
    %242 = vmatprep.mubr.f32.mxu0 0.0
    %243 = vmatmul.mubr.f32.gmra.mxu0 %v149
    %v244 = vpop.f32.mrf.mxu0
    %v245 = vadd.f32 %v171, %v244
    %v246 = vpop.f32.mrf.mxu0
    %247 = vdwg.mxu0
    %248 = vst [vmem:[%s5] sm:$0xff] %v240
    %249 = vst [vmem:[%s5 + $0x8] sm:$0xff] %v245
    // Predicated region
    $region30: #{_ffn_call.1} parent=1 // pred_check
      _
    $region31: #{_ffn_call.1} parent=1 // pred_check_branch
      %251 = sbr.rel (0) target = $region33
    $region32: #{_ffn_call.1} parent=1 // pred_region
      _
    $region33: #{_ffn_call.1} parent=1 // pred_fallthru
      _
    // Predicated region
    $region34: #{_ffn_call.1} parent=1 // pred_check
      _
    $region35: #{_ffn_call.1} parent=1 // pred_check_branch
      %253 = sbr.rel (0) target = $region37
    $region36: #{_ffn_call.1} parent=1 // pred_region
      _
    $region37: #{_ffn_call.1} parent=1 // pred_fallthru
      _
    %254 = vsyncpa [#allocation3], 1
    %255 = vsyncpa [#allocation5], 1

</llo_original>
